<compile_context>
chip_gen: v6e
topology: v6e:2x2x1
jax: 0.10.0
libtpu: 0.0.40
codegen_flags: <defaults>
</compile_context>

<pallas_src>
import jax
import jax.numpy as jnp
from jax.experimental import pallas as pl
from jax.experimental.pallas import tpu as pltpu

LANE = 128
MAX_TILE = 4096
TARGET_STEPS = 4  # aim for ~4 grid steps over V*3


def _ceil_to(x, m):
    return ((x + m - 1) // m) * m


def choose_tile(v3, *, target_steps=TARGET_STEPS, max_tile=MAX_TILE, lane=LANE):
    """Lane tile for the blend: a multiple of 128 giving ~`target_steps` grid
    steps (the kernel is HBM-bound, so fewer/larger lane-dense tiles amortise
    per-step overhead), preferring an even step count >= 2 so v7x megacore can
    shard the grid across both TensorCores."""
    tile = _ceil_to(max(1, -(-v3 // target_steps)), lane)
    tile = max(lane, min(tile, max_tile))
    steps = -(-v3 // tile)
    if steps == 1 and v3 > lane:
        tile = _ceil_to(-(-v3 // 2), lane)          # avoid a single-step grid
    elif steps % 2 == 1 and steps > 1:
        tile = _ceil_to(-(-v3 // (steps + 1)), lane)  # prefer an even step count
    return tile


# ---------------------------------------------------------------------------
# Pallas kernel: fused blendshape combination, tiled over the V*3 lane axis.
#   out[:, j*T:(j+1)*T] = idle + coef @ dirs_cat    (coef = [exp, pose_feat])
# ---------------------------------------------------------------------------
def _blend_kernel(coef_ref, idle_ref, dirs_ref, out_ref):
    # coef : (B, K)  f32, resident across the grid (tiny).
    # idle : (Bi, T) f32 with Bi in {1, B}; broadcasting handles the shared
    #        v_template case.
    # dirs : (K, T)  bf16 -- the dominant HBM stream.
    # out  : (B, T)  f32.
    coef = coef_ref[...].astype(dirs_ref.dtype)
    blend = jnp.dot(coef, dirs_ref[...], preferred_element_type=jnp.float32)
    out_ref[...] = (idle_ref[...] + blend).astype(out_ref.dtype)


def blend(coef, idle_flat, dirs_cat, *, tile=None):
    B, K = coef.shape
    Bi, V3 = idle_flat.shape
    assert dirs_cat.shape == (K, V3)
    if tile is None:
        tile = choose_tile(V3)
    grid = (pl.cdiv(V3, tile),)
    return pl.pallas_call(
        _blend_kernel,
        out_shape=jax.ShapeDtypeStruct((B, V3), jnp.float32),
        grid_spec=pltpu.PrefetchScalarGridSpec(
            num_scalar_prefetch=0,
            grid=grid,
            in_specs=[
                pl.BlockSpec((B, K), lambda j: (0, 0)),      # coefficients (resident)
                pl.BlockSpec((Bi, tile), lambda j: (0, j)),  # idle / v_template stream
                pl.BlockSpec((K, tile), lambda j: (0, j)),   # concatenated bf16 basis
            ],
            out_specs=pl.BlockSpec((B, tile), lambda j: (0, j)),
        ),
        compiler_params=pltpu.CompilerParams(
            dimension_semantics=("parallel",),
        ),
    )(coef, idle_flat, dirs_cat)


# ---------------------------------------------------------------------------
# Tiny XLA-side pieces (projections + Rodrigues): below pallas_call overhead.
# ---------------------------------------------------------------------------
def _rodrigues_pose_feature(jaw):
    """Batched Rodrigues -> flattened (R - I), shape (B, 9)."""
    theta = jnp.sqrt(jnp.sum(jaw * jaw, axis=-1, keepdims=True) + 1e-8)
    k = jaw / theta
    c = jnp.cos(theta)
    s = jnp.sin(theta)
    C = 1.0 - c
    kx, ky, kz = k[:, 0:1], k[:, 1:2], k[:, 2:3]
    R = jnp.concatenate(
        [
            c + kx * kx * C, kx * ky * C - kz * s, kx * kz * C + ky * s,
            ky * kx * C + kz * s, c + ky * ky * C, ky * kz * C - kx * s,
            kz * kx * C - ky * s, kz * ky * C + kx * s, c + kz * kz * C,
        ],
        axis=-1,
    )
    eye = jnp.eye(3, dtype=jaw.dtype).reshape(1, 9)
    return R - eye


def prepare_params(raw_params):
    """One-time setup (outside jit): concat the blendshape bases into a single
    (n_exp+9, V3) matrix and cast it to bf16 (it is the dominant HBM stream)."""
    dirs_cat = jnp.concatenate(
        [raw_params["exp_dirs"], raw_params["pose_dirs"]], axis=0
    ).astype(jnp.bfloat16)
    return {
        "w_exp": raw_params["w_exp"],
        "b_exp": raw_params["b_exp"],
        "w_jaw": raw_params["w_jaw"],
        "b_jaw": raw_params["b_jaw"],
        "dirs_cat": dirs_cat,
    }


# ---------------------------------------------------------------------------
# Full _Morphable.forward equivalent.
# ---------------------------------------------------------------------------
def morphable_forward(z, idle_verts, params, *, tile=None):
    # Projections (identity activation) + Rodrigues pose feature in plain XLA.
    exp = jnp.dot(z, params["w_exp"]) + params["b_exp"]
    jaw = jnp.dot(z, params["w_jaw"]) + params["b_jaw"]
    pose_feat = _rodrigues_pose_feature(jaw)
    coef = jnp.concatenate([exp, pose_feat], axis=-1)  # (B, n_exp + 9)

    B = z.shape[0]
    if idle_verts.ndim == 2:  # shared template (V, 3)
        idle_flat = idle_verts.reshape(1, -1)
    else:  # per-batch (B, V, 3)
        idle_flat = idle_verts.reshape(idle_verts.shape[0], -1)

    V3 = idle_flat.shape[1]
    assert params["dirs_cat"].shape[1] == V3

    out_flat = blend(coef, idle_flat, params["dirs_cat"], tile=tile)
    out_verts = out_flat.reshape(B, V3 // 3, 3)
    code_dict = {"exp": exp, "jaw_pose": jaw}
    return out_verts, code_dict


if __name__ == "__main__":
    # Small, FLAME-consistent synthetic shapes.  V*3 = 3000 is deliberately
    # NOT a multiple of 128 to exercise the clipped edge block.
    B, C = 4, 32        # batch, in_ch
    N_EXP = 16          # morphable.n_exp
    V = 1000            # number of vertices

    key = jax.random.PRNGKey(0)
    k_z, k_idle, k_we, k_wj, k_ed, k_pd = jax.random.split(key, 6)

    z = jax.random.normal(k_z, (B, C), dtype=jnp.float32)
    idle_verts = jax.random.normal(k_idle, (B, V, 3), dtype=jnp.float32)

    raw_params = {
        # proj_exp: Linear(in_ch -> n_exp)
        "w_exp": jax.random.normal(k_we, (C, N_EXP), dtype=jnp.float32)
        / jnp.sqrt(jnp.float32(C)),
        "b_exp": jnp.zeros((N_EXP,), dtype=jnp.float32),
        # proj_jaw: Linear(in_ch -> 3), init gain 0.01
        "w_jaw": 0.01
        * jax.random.normal(k_wj, (C, 3), dtype=jnp.float32)
        / jnp.sqrt(jnp.float32(C)),
        "b_jaw": jnp.zeros((3,), dtype=jnp.float32),
        # FLAME blendshape bases (deterministic synthetic stand-ins)
        "exp_dirs": 0.01 * jax.random.normal(k_ed, (N_EXP, V * 3), dtype=jnp.float32),
        "pose_dirs": 0.01 * jax.random.normal(k_pd, (9, V * 3), dtype=jnp.float32),
    }
    params = prepare_params(raw_params)

    fwd = jax.jit(morphable_forward)
    out_verts, code_dict = fwd(z, idle_verts, params)
    jax.block_until_ready((out_verts, code_dict))

    # Pure-JAX f32 reference check (kernel uses bf16 dirs/coef with f32
    # accumulation; blend term is ~0.05 scale so <=1e-3 abs deviation expected).
    exp_ref = z @ raw_params["w_exp"] + raw_params["b_exp"]
    jaw_ref = z @ raw_params["w_jaw"] + raw_params["b_jaw"]
    pose_ref = _rodrigues_pose_feature(jaw_ref)
    ref = (
        idle_verts.reshape(B, V * 3)
        + exp_ref @ raw_params["exp_dirs"]
        + pose_ref @ raw_params["pose_dirs"]
    ).reshape(B, V, 3)

    assert out_verts.shape == (B, V, 3)
    assert code_dict["exp"].shape == (B, N_EXP)
    assert code_dict["jaw_pose"].shape == (B, 3)
    assert jnp.allclose(code_dict["exp"], exp_ref, atol=1e-5, rtol=1e-5)
    assert jnp.allclose(code_dict["jaw_pose"], jaw_ref, atol=1e-5, rtol=1e-5)
    assert jnp.allclose(out_verts, ref, atol=5e-3, rtol=5e-3)

    # Shared-template path (v_template broadcast inside the kernel, Bi = 1).
    idle_shared = jax.random.normal(jax.random.PRNGKey(1), (V, 3), dtype=jnp.float32)
    out_shared, _ = fwd(z, idle_shared, params)
    jax.block_until_ready(out_shared)
    ref_shared = (
        idle_shared.reshape(1, V * 3)
        + exp_ref @ raw_params["exp_dirs"]
        + pose_ref @ raw_params["pose_dirs"]
    ).reshape(B, V, 3)
    assert out_shared.shape == (B, V, 3)
    assert jnp.allclose(out_shared, ref_shared, atol=5e-3, rtol=5e-3)

    print("KERNEL_OK")
</pallas_src>

<mosaic_0001>
module attributes {stable_mosaic.version = 11 : i64} {
  func.func @_blend_kernel(%arg0: i32, %arg1: memref<4x25xf32, #tpu.memory_space<vmem>>, %arg2: memref<4x768xf32, #tpu.memory_space<vmem>>, %arg3: memref<25x768xbf16, #tpu.memory_space<vmem>>, %arg4: memref<4x768xf32, #tpu.memory_space<vmem>>) attributes {dimension_semantics = [#tpu.dimension_semantics<parallel>], iteration_bounds = array<i64: 4>, scalar_prefetch = 0 : i64, scratch_operands = 0 : i64, tpu.core_type = #tpu.core_type<tc>, window_params = [{pipeline_mode = #tpu.pipeline_mode<synchronous>, transform_indices = @transform_0, window_bounds = array<i64: 4, 25>}, {transform_indices = @transform_1, window_bounds = array<i64: 4, 768>}, {transform_indices = @transform_2, window_bounds = array<i64: 25, 768>}, {transform_indices = @transform_3, window_bounds = array<i64: 4, 768>}]} {
    %c0 = arith.constant 0 : index
    %c0_0 = arith.constant 0 : index
    %0 = vector.load %arg1[%c0, %c0_0] : memref<4x25xf32, #tpu.memory_space<vmem>>, vector<4x25xf32>
    %1 = arith.truncf %0 : vector<4x25xf32> to vector<4x25xbf16>
    %c0_1 = arith.constant 0 : index
    %c0_2 = arith.constant 0 : index
    %2 = vector.load %arg3[%c0_1, %c0_2] : memref<25x768xbf16, #tpu.memory_space<vmem>>, vector<25x768xbf16>
    %cst = arith.constant dense<0.000000e+00> : vector<4x768xf32>
    %3 = tpu.matmul %1, %2, %cst {dimension_numbers = #tpu.dot_dimension_numbers<[1], [0], [0], [1], [0, 0, 1, 1], [], []>} : vector<4x25xbf16>, vector<25x768xbf16>, vector<4x768xf32> -> vector<4x768xf32>
    %c0_3 = arith.constant 0 : index
    %c0_4 = arith.constant 0 : index
    %4 = vector.load %arg2[%c0_3, %c0_4] : memref<4x768xf32, #tpu.memory_space<vmem>>, vector<4x768xf32>
    %5 = arith.addf %4, %3 : vector<4x768xf32>
    %c0_5 = arith.constant 0 : index
    %c0_6 = arith.constant 0 : index
    %6 = vector.load %arg4[%c0_5, %c0_6] : memref<4x768xf32, #tpu.memory_space<vmem>>, vector<4x768xf32>
    tpu.vector_store %arg4[%c0_5, %c0_6], %5 {strides = array<i32>} : memref<4x768xf32, #tpu.memory_space<vmem>>, vector<4x768xf32>,
    return
  }
  func.func @transform_0(%arg0: i32) -> (i32, i32) {
    %c0_i32 = arith.constant 0 : i32
    %c0_i32_0 = arith.constant 0 : i32
    %c0_i32_1 = arith.constant 0 : i32
    return %c0_i32, %c0_i32_0 : i32, i32
  }
  func.func @transform_1(%arg0: i32) -> (i32, i32) {
    %c0_i32 = arith.constant 0 : i32
    %c0_i32_0 = arith.constant 0 : i32
    return %c0_i32, %arg0 : i32, i32
  }
  func.func @transform_2(%arg0: i32) -> (i32, i32) {
    %c0_i32 = arith.constant 0 : i32
    %c0_i32_0 = arith.constant 0 : i32
    return %c0_i32, %arg0 : i32, i32
  }
  func.func @transform_3(%arg0: i32) -> (i32, i32) {
    %c0_i32 = arith.constant 0 : i32
    %c0_i32_0 = arith.constant 0 : i32
    return %c0_i32, %arg0 : i32, i32
  }
}

</mosaic_0001>

<llo_original>
// kernel: morphable_forward.1
$region0: #{morphable_forward.1}
  #allocation0 [shape = 'u32[]', space=smem, size = 0x4, offset = 0x4, fixed_abs, tag = 'smem constant byte address 0x4 - core index']
  #allocation1 [shape = 'u32[144,128]{1,0:T(1,128)}', space=vmem, size = 0x12000, scoped, tag = 'internal scratch']
  %s0 = inlined_call_operand.vmem [shape: f32[4,25], index: 0, kind: input, shape index: {}]
  %s1 = inlined_call_operand.vmem [shape: f32[4,3000], index: 1, kind: input, shape index: {}]
  %s2 = inlined_call_operand.vmem [shape: bf16[25,3000], index: 2, kind: input, shape index: {}]
  %s3 = inlined_call_operand.vmem [shape: f32[4,3000], index: 3, kind: output, shape index: {}]
  %s4 = sld [smem:[#allocation0]]
  $region68: #{morphable_forward.1} parent=0
    _
  %s6 = ssub.s32 1, %s4
  %s7 = scalar_select 0, %s6, %s4
  $region1: #{morphable_forward.1} parent=0
    #allocation2 [shape = 'u8[98304]{0}', space=vmem, size = 0x18000, scoped, tag = 'input window, operand 2']
    loop: start=0, step=1, limit=6
    $region2: #{morphable_forward.1} parent=1 // loop_pre_header
      _
    $region3: #{morphable_forward.1} parent=1 // loop_header
      %s9 = sphi 0, %s13
      %p10 = scmp.ge.s32.totalorder %s9, 6
      %s17 = sphi 0, %s17
      %s19 = sphi 0, %s17
      %s20 = sphi 0, %s19
      %s34 = sphi 0, %s20
      %s40 = sphi 0, %s42
      %s43 = sphi 0, %s40
      %s44 = sphi 0, %s43
      %s60 = sphi 0, %s44
      %s66 = sphi 0, %s68
      %s69 = sphi 0, %s66
      %s70 = sphi 0, %s69
      %s86 = sphi 0, %s70
      %s92 = sphi 0, %s94
      %s95 = sphi 0, %s92
      %s96 = sphi 0, %s95
      %s112 = sphi 0, %s96
    $region4: #{morphable_forward.1} parent=1 // loop_header_branch
      %12 = sbr.rel (%p10) target = $region8
    $region5: #{morphable_forward.1} parent=1 // loop_body
      %s14 = ssub.s32 %s9, 1
      %s15 = ssub.s32 %s9, 2
      %s16 = sadd.s32 %s9, 1
      %s18 = sadd.s32 %s17, 1
      %p21 = scmp.eq.s32.totalorder %s9, 3
      %p22 = scmp.ne.s32.totalorder %s17, %s19
      %p23 = scmp.eq.s32.totalorder %s9, 0
      %p24 = por %p22, %p23
      %p25 = scmp.ne.s32.totalorder %s17, %s19
      %p26 = scmp.eq.s32.totalorder %s14, 3
      %p27 = por %p25, %p26
      %p28 = scmp.ne.s32.totalorder %s19, %s20
      %p29 = scmp.eq.s32.totalorder %s14, 0
      %p30 = por %p28, %p29
      %p31 = scmp.ne.s32.totalorder %s19, %s20
      %p32 = scmp.eq.s32.totalorder %s15, 3
      %p33 = por %p31, %p32
      %p35 = scmp.ne.s32.totalorder %s20, %s34
      %p36 = scmp.eq.s32.totalorder %s15, 0
      %p37 = por %p35, %p36
      %s38 = ssub.s32 %s9, %s16
      %p39 = scmp.eq.s32.totalorder %s38, 0
      %s41 = sadd.s32 %s40, 1
      %s42 = scalar_select %p39, %s40, %s41
      %p45 = pneg %p39
      %p46 = scmp.eq.s32.totalorder %s9, 3
      %p47 = por %p45, %p46
      %p48 = scmp.ne.s32.totalorder %s40, %s43
      %p49 = scmp.eq.s32.totalorder %s9, 0
      %p50 = por %p48, %p49
      %p51 = scmp.ne.s32.totalorder %s40, %s43
      %p52 = scmp.eq.s32.totalorder %s14, 3
      %p53 = por %p51, %p52
      %p54 = scmp.ne.s32.totalorder %s43, %s44
      %p55 = scmp.eq.s32.totalorder %s14, 0
      %p56 = por %p54, %p55
      %p57 = scmp.ne.s32.totalorder %s43, %s44
      %p58 = scmp.eq.s32.totalorder %s15, 3
      %p59 = por %p57, %p58
      %p61 = scmp.ne.s32.totalorder %s44, %s60
      %p62 = scmp.eq.s32.totalorder %s15, 0
      %p63 = por %p61, %p62
      %s64 = ssub.s32 %s9, %s16
      %p65 = scmp.eq.s32.totalorder %s64, 0
      %s67 = sadd.s32 %s66, 1
      %s68 = scalar_select %p65, %s66, %s67
      %p71 = pneg %p65
      %p72 = scmp.eq.s32.totalorder %s9, 3
      %p73 = por %p71, %p72
      %p74 = scmp.ne.s32.totalorder %s66, %s69
      %p75 = scmp.eq.s32.totalorder %s9, 0
      %p76 = por %p74, %p75
      %p77 = scmp.ne.s32.totalorder %s66, %s69
      %p78 = scmp.eq.s32.totalorder %s14, 3
      %p79 = por %p77, %p78
      %p80 = scmp.ne.s32.totalorder %s69, %s70
      %p81 = scmp.eq.s32.totalorder %s14, 0
      %p82 = por %p80, %p81
      %p83 = scmp.ne.s32.totalorder %s69, %s70
      %p84 = scmp.eq.s32.totalorder %s15, 3
      %p85 = por %p83, %p84
      %p87 = scmp.ne.s32.totalorder %s70, %s86
      %p88 = scmp.eq.s32.totalorder %s15, 0
      %p89 = por %p87, %p88
      %s90 = ssub.s32 %s9, %s16
      %p91 = scmp.eq.s32.totalorder %s90, 0
      %s93 = sadd.s32 %s92, 1
      %s94 = scalar_select %p91, %s92, %s93
      %p97 = pneg %p91
      %p98 = scmp.eq.s32.totalorder %s9, 3
      %p99 = por %p97, %p98
      %p100 = scmp.ne.s32.totalorder %s92, %s95
      %p101 = scmp.eq.s32.totalorder %s9, 0
      %p102 = por %p100, %p101
      %p103 = scmp.ne.s32.totalorder %s92, %s95
      %p104 = scmp.eq.s32.totalorder %s14, 3
      %p105 = por %p103, %p104
      %p106 = scmp.ne.s32.totalorder %s95, %s96
      %p107 = scmp.eq.s32.totalorder %s14, 0
      %p108 = por %p106, %p107
      %p109 = scmp.ne.s32.totalorder %s95, %s96
      %p110 = scmp.eq.s32.totalorder %s15, 3
      %p111 = por %p109, %p110
      %p113 = scmp.ne.s32.totalorder %s96, %s112
      %p114 = scmp.eq.s32.totalorder %s15, 0
      %p115 = por %p113, %p114
      %p116 = scmp.le.s32.totalorder 1, %s9
      %p117 = scmp.lt.s32.totalorder %s9, 5
      %p118 = pnand %p116, %p117
      %p119 = pneg %p118
      // Predicated region
      $region9: #{morphable_forward.1} parent=5 // pred_check
        _
      $region10: #{morphable_forward.1} parent=5 // pred_check_branch
        %121 = sbr.rel (%p118) target = $region12
      $region11: #{morphable_forward.1} parent=5 // pred_region
        %s122 = ssub.s32 %s9, 1
        // Predicated region
        $region13: #{morphable_forward.1} parent=11 // pred_check
          %p123 = pneg %p30
        $region14: #{morphable_forward.1} parent=11 // pred_check_branch
          %125 = sbr.rel (%p123) target = $region16
        $region15: #{morphable_forward.1} parent=11 // pred_region
          _
        $region16: #{morphable_forward.1} parent=11 // pred_fallthru
          _
      $region12: #{morphable_forward.1} parent=5 // pred_fallthru
        _
      %p126 = scmp.lt.s32.totalorder %s9, 4
      // Predicated region
      $region17: #{morphable_forward.1} parent=5 // pred_check
        %p127 = pneg %p126
      $region18: #{morphable_forward.1} parent=5 // pred_check_branch
        %129 = sbr.rel (%p127) target = $region20
      $region19: #{morphable_forward.1} parent=5 // pred_region
        // Predicated region
        $region21: #{morphable_forward.1} parent=19 // pred_check
          %p130 = pneg %p50
        $region22: #{morphable_forward.1} parent=19 // pred_check_branch
          %132 = sbr.rel (%p130) target = $region24
        $region23: #{morphable_forward.1} parent=19 // pred_region
          %s133 = smul.u32 6, %s9
          %p134 = scmp.lt.s32.totalorder %s133, 23
          %s135 = scalar_select %p134, %s133, 23
          %s136 = smul.addr %s135, 4
          %s137 = scalar_lea.vmem %s1, %s136
          %s138 = smul.u32 6, %s9
        $region24: #{morphable_forward.1} parent=19 // pred_fallthru
          _
        // Predicated region
        $region25: #{morphable_forward.1} parent=19 // pred_check
          %p139 = pneg %p76
        $region26: #{morphable_forward.1} parent=19 // pred_check_branch
          %141 = sbr.rel (%p139) target = $region28
        $region27: #{morphable_forward.1} parent=19 // pred_region
          %s142 = sand.u32 %s66, 1
          %s143 = sand.u32 %s66, 1
          %s144 = smul.addr %s143, 96
          %s145 = scalar_lea.vmem [#allocation2], %s144
          %s146 = smul.u32 6, %s9
          %s147 = smul.addr %s146, 4
          %s148 = scalar_lea.vmem %s2, %s147
          // Predicated region
          $region29: #{morphable_forward.1} parent=27 // pred_check
            _
          $region30: #{morphable_forward.1} parent=27 // pred_check_branch
            %150 = sbr.rel (0) target = $region32
          $region31: #{morphable_forward.1} parent=27 // pred_region
            // Predicated region
            $region33: #{morphable_forward.1} parent=31 // pred_check
              _
            $region34: #{morphable_forward.1} parent=31 // pred_check_branch
              %152 = sbr.rel (0) target = $region36
            $region35: #{morphable_forward.1} parent=31 // pred_region
              loop: start=0, step=1, limit=1
              $region37: #{morphable_forward.1} parent=35 // loop_pre_header
                _
              $region38: #{morphable_forward.1} parent=35 // loop_header
                %s154 = sphi 0, %s158
                %p155 = scmp.ge.s32.totalorder %s154, 1
                %s159 = sphi %s148, %s148
                %s160 = sphi %s145, %s145
              $region39: #{morphable_forward.1} parent=35 // loop_header_branch
                %157 = sbr.rel (%p155) target = $region43
              $region40: #{morphable_forward.1} parent=35 // loop_body
                %v161 = vld [vmem:[%s159] sm:$0xff]
                %162 = vst [vmem:[%s160] sm:$0xff] %v161
                %v163 = vld [vmem:[%s159 + $0x8] sm:$0xff]
                %164 = vst [vmem:[%s160 + $0x8] sm:$0xff] %v163
                %v165 = vld [vmem:[%s159 + $0x10] sm:$0xff]
                %166 = vst [vmem:[%s160 + $0x10] sm:$0xff] %v165
                %v167 = vld [vmem:[%s159 + $0x60] sm:$0xff]
                %168 = vst [vmem:[%s160 + $0x18] sm:$0xff] %v167
                %v169 = vld [vmem:[%s159 + $0x68] sm:$0xff]
                %170 = vst [vmem:[%s160 + $0x20] sm:$0xff] %v169
                %v171 = vld [vmem:[%s159 + $0x70] sm:$0xff]
                %172 = vst [vmem:[%s160 + $0x28] sm:$0xff] %v171
                %v173 = vld [vmem:[%s159 + $0xc0] sm:$0xff]
                %174 = vst [vmem:[%s160 + $0x30] sm:$0xff] %v173
                %v175 = vld [vmem:[%s159 + $0xc8] sm:$0xff]
                %176 = vst [vmem:[%s160 + $0x38] sm:$0xff] %v175
                %v177 = vld [vmem:[%s159 + $0xd0] sm:$0xff]
                %178 = vst [vmem:[%s160 + $0x40] sm:$0xff] %v177
                %v179 = vld [vmem:[%s159 + $0x120] sm:$0xff]
                %180 = vst [vmem:[%s160 + $0x48] sm:$0xff] %v179
                %v181 = vld [vmem:[%s159 + $0x128] sm:$0xff]
                %182 = vst [vmem:[%s160 + $0x50] sm:$0xff] %v181
                %v183 = vld [vmem:[%s159 + $0x130] sm:$0xff]
                %184 = vst [vmem:[%s160 + $0x58] sm:$0xff] %v183
              $region41: #{morphable_forward.1} parent=35 // loop_footer
                %s158 = sadd.s32 1, %s154
              $region42: #{morphable_forward.1} parent=35 // loop_footer_branch
                %153 = sbr.rel target = $region38
              $region43: #{morphable_forward.1} parent=35 // loop_exit
                _
            $region36: #{morphable_forward.1} parent=31 // pred_fallthru
              _
            // Predicated region
            $region44: #{morphable_forward.1} parent=31 // pred_check
              _
            $region45: #{morphable_forward.1} parent=31 // pred_check_branch
              %186 = sbr.rel target = $region47
            $region46: #{morphable_forward.1} parent=31 // pred_region
              _
            $region47: #{morphable_forward.1} parent=31 // pred_fallthru
              _
          $region32: #{morphable_forward.1} parent=27 // pred_fallthru
            _
          %187 = vnop
        $region28: #{morphable_forward.1} parent=19 // pred_fallthru
          _
      $region20: #{morphable_forward.1} parent=5 // pred_fallthru
        _
      %p188 = scmp.le.s32.totalorder 1, %s9
      %p189 = scmp.lt.s32.totalorder %s9, 5
      %p190 = pnand %p188, %p189
      %p191 = pneg %p190
      // Predicated region
      $region48: #{morphable_forward.1} parent=5 // pred_check
        _
      $region49: #{morphable_forward.1} parent=5 // pred_check_branch
        %193 = sbr.rel (%p190) target = $region51
      $region50: #{morphable_forward.1} parent=5 // pred_region
        %s194 = ssub.s32 %s9, 1
        %s195 = sand.u32 %s69, 1
        %s196 = sand.u32 %s69, 1
        %s197 = smul.addr %s196, 96
        %s198 = scalar_lea.vmem [#allocation2], %s197
        // Predicated region
        $region52: #{morphable_forward.1} parent=50 // pred_check
          %p199 = pneg %p82
        $region53: #{morphable_forward.1} parent=50 // pred_check_branch
          %201 = sbr.rel (%p199) target = $region55
        $region54: #{morphable_forward.1} parent=50 // pred_region
          _
        $region55: #{morphable_forward.1} parent=50 // pred_fallthru
          _
        %p202 = pneg %p30
        %p203 = pneg %p27
        %s204 = smul.u32 6, %s14
        %p205 = scmp.lt.s32.totalorder %s204, 23
        %s206 = scalar_select %p205, %s204, 23
        %s207 = smul.addr %s206, 4
        %s208 = scalar_lea.vmem %s1, %s207
        %p209 = pneg %p56
        %p210 = pneg %p53
        %s211 = sand.u32 %s69, 1
        %s212 = sand.u32 %s69, 1
        %s213 = smul.addr %s212, 96
        %s214 = scalar_lea.vmem [#allocation2], %s213
        %p215 = pneg %p82
        %p216 = pneg %p79
        %p217 = pneg %p108
        %p218 = pneg %p105
        %s219 = smul.u32 6, %s14
        %p220 = scmp.lt.s32.totalorder %s219, 23
        %s221 = scalar_select %p220, %s219, 23
        %s222 = smul.addr %s221, 4
        %s223 = scalar_lea.vmem %s3, %s222
        %s224 = smul.u32 6, %s14
        %p225 = scmp.lt.s32.totalorder %s224, 23
        %s226 = scalar_select %p225, %s224, 23
        %s227 = smul.addr %s226, 4
        %s228 = scalar_lea.vmem %s1, %s227
        %s229 = smul.u32 6, %s14
        %s230 = smul.u32 6, %s14
        %s231 = smul.u32 6, %s14
        %p232 = scmp.lt.s32.totalorder %s231, 23
        %s233 = scalar_select %p232, %s231, 23
        %s234 = smul.addr %s233, 4
        %s235 = scalar_lea.vmem %s3, %s234
        %s236 = smul.u32 6, %s14
        %v238 = vld [vmem:[%s0] sm:$0xf]
        %v239 = vpack.c.bf16 %v238, %v238
        %v240 = vld [vmem:[%s198] sm:$0xff]
        %v241 = vld [vmem:[%s198 + $0x8] sm:$0xff]
        %v242 = vld [vmem:[%s198 + $0x10] sm:$0xff]
        %v243 = vld [vmem:[%s198 + $0x18] sm:$0xff]
        %v244 = vld [vmem:[%s198 + $0x20] sm:$0xff]
        %v245 = vld [vmem:[%s198 + $0x28] sm:$0xff]
        %v246 = vld [vmem:[%s198 + $0x30] sm:$0xff]
        %v247 = vld [vmem:[%s198 + $0x38] sm:$0xff]
        %v248 = vld [vmem:[%s198 + $0x40] sm:$0xff]
        %v249 = vld [vmem:[%s198 + $0x48] sm:$0x11]
        %v250 = vld [vmem:[%s198 + $0x50] sm:$0x11]
        %v251 = vld [vmem:[%s198 + $0x58] sm:$0x11]
        %v264 = vunpack.c.l.b16 %v240
        %v265 = vunpack.c.h.b16 %v240
        %v266 = vunpack.c.l.b16 %v241
        %v267 = vunpack.c.h.b16 %v241
        %v268 = vunpack.c.l.b16 %v242
        %v269 = vunpack.c.h.b16 %v242
        %v270 = vunpack.c.l.b16 %v243
        %v271 = vunpack.c.h.b16 %v243
        %v272 = vunpack.c.l.b16 %v244
        %v273 = vunpack.c.h.b16 %v244
        %v274 = vunpack.c.l.b16 %v245
        %v275 = vunpack.c.h.b16 %v245
        %v276 = vunpack.c.l.b16 %v246
        %v277 = vunpack.c.h.b16 %v246
        %v278 = vunpack.c.l.b16 %v247
        %v279 = vunpack.c.h.b16 %v247
        %v280 = vunpack.c.l.b16 %v248
        %v281 = vunpack.c.h.b16 %v248
        %v282 = vunpack.c.l.b16 %v249
        %v283 = vunpack.c.h.b16 %v249
        %v284 = vunpack.c.l.b16 %v250
        %v285 = vunpack.c.h.b16 %v250
        %v286 = vunpack.c.l.b16 %v251
        %v287 = vunpack.c.h.b16 %v251
        %v288 = vpack.c.b16 %v270, %v264
        %v289 = vpack.c.b16 %v271, %v265
        %v290 = vpack.c.b16 %v272, %v266
        %v291 = vpack.c.b16 %v273, %v267
        %v292 = vpack.c.b16 %v274, %v268
        %v293 = vpack.c.b16 %v275, %v269
        %v294 = vpack.c.b16 %v282, %v276
        %v295 = vpack.c.b16 %v283, %v277
        %v296 = vpack.c.b16 %v284, %v278
        %v297 = vpack.c.b16 %v285, %v279
        %v298 = vpack.c.b16 %v286, %v280
        %v299 = vpack.c.b16 %v287, %v281
        %vm306 = vcmask 203776
        %v308 = vsel %vm306, %v239, 0
        %vm310 = vcmask 1043456
        %vm311 = vcmask 1044480
        %v312 = vsel %vm310, 4294967295, 65535
        %v313 = vsel %vm311, %v312, 0
        %v315 = vand.u32 %v294, %v313
        %v318 = vand.u32 %v295, %v313
        %v321 = vand.u32 %v296, %v313
        %v324 = vand.u32 %v297, %v313
        %v327 = vand.u32 %v298, %v313
        %v330 = vand.u32 %v299, %v313
        %332 = vmatprep.subr.bf16.mxu0 0
        %333 = vmatpush1.bf16.msra.mxu0 0
        %334 = vmatprep.subr.bf16.mxu0 0
        %335 = vmatpush1.bf16.msra.mxu0 0
        %336 = vmatprep.subr.bf16.mxu0 0
        %337 = vmatpush1.bf16.msra.mxu0 0
        %338 = vmatprep.subr.bf16.mxu0 0
        %339 = vmatpush1.bf16.msra.mxu0 0
        %340 = vmatprep.subr.bf16.mxu0 0
        %341 = vmatpush1.bf16.msra.mxu0 0
        %342 = vmatprep.subr.bf16.mxu0 0
        %343 = vmatpush1.bf16.msra.mxu0 0
        %344 = vmatprep.subr.bf16.mxu0 %v318
        %345 = vmatpush1.bf16.msra.mxu0 %v315
        %346 = vmatprep.subr.bf16.mxu0 %v289
        %347 = vmatpush1.bf16.msra.mxu0 %v288
        %348 = vmatprep.subr.bf16.mxu0 0
        %349 = vmatpush2.bf16.msra.mxu0 0
        %350 = vmatprep.subr.bf16.mxu0 0
        %351 = vmatpush2.bf16.msra.mxu0 0
        %352 = vmatprep.subr.bf16.mxu0 0
        %353 = vmatpush2.bf16.msra.mxu0 0
        %354 = vmatprep.subr.bf16.mxu0 0
        %355 = vmatpush2.bf16.msra.mxu0 0
        %356 = vmatprep.subr.bf16.mxu0 0
        %357 = vmatpush2.bf16.msra.mxu0 0
        %358 = vmatprep.subr.bf16.mxu0 0
        %359 = vmatpush2.bf16.msra.mxu0 0
        %360 = vmatprep.subr.bf16.mxu0 0
        %361 = vmatpush2.bf16.msra.mxu0 0
        %362 = vmatprep.subr.bf16.mxu0 0
        %363 = vmatpush2.bf16.msra.mxu0 0
        %364 = vmatprep.mubr.bf16.mxu0 0
        %365 = vmatmul.mubr.bf16.gmra.mxu0 %v308
        %v366 = vpop.f32.mrf.mxu0
        %v367 = vadd.f32 0.0, %v366
        %v368 = vpop.f32.mrf.mxu0
        %v369 = vadd.f32 0.0, %v368
        %v370 = vpop.f32.mrf.mxu0
        %v371 = vpop.f32.mrf.mxu0
        %372 = vdwg.mxu0
        %373 = vmatprep.subr.bf16.mxu0 0
        %374 = vmatpush1.bf16.msra.mxu0 0
        %375 = vmatprep.subr.bf16.mxu0 0
        %376 = vmatpush1.bf16.msra.mxu0 0
        %377 = vmatprep.subr.bf16.mxu0 0
        %378 = vmatpush1.bf16.msra.mxu0 0
        %379 = vmatprep.subr.bf16.mxu0 0
        %380 = vmatpush1.bf16.msra.mxu0 0
        %381 = vmatprep.subr.bf16.mxu0 0
        %382 = vmatpush1.bf16.msra.mxu0 0
        %383 = vmatprep.subr.bf16.mxu0 0
        %384 = vmatpush1.bf16.msra.mxu0 0
        %385 = vmatprep.subr.bf16.mxu0 %v324
        %386 = vmatpush1.bf16.msra.mxu0 %v321
        %387 = vmatprep.subr.bf16.mxu0 %v291
        %388 = vmatpush1.bf16.msra.mxu0 %v290
        %389 = vmatprep.subr.bf16.mxu0 0
        %390 = vmatpush2.bf16.msra.mxu0 0
        %391 = vmatprep.subr.bf16.mxu0 0
        %392 = vmatpush2.bf16.msra.mxu0 0
        %393 = vmatprep.subr.bf16.mxu0 0
        %394 = vmatpush2.bf16.msra.mxu0 0
        %395 = vmatprep.subr.bf16.mxu0 0
        %396 = vmatpush2.bf16.msra.mxu0 0
        %397 = vmatprep.subr.bf16.mxu0 0
        %398 = vmatpush2.bf16.msra.mxu0 0
        %399 = vmatprep.subr.bf16.mxu0 0
        %400 = vmatpush2.bf16.msra.mxu0 0
        %401 = vmatprep.subr.bf16.mxu0 0
        %402 = vmatpush2.bf16.msra.mxu0 0
        %403 = vmatprep.subr.bf16.mxu0 0
        %404 = vmatpush2.bf16.msra.mxu0 0
        %405 = vmatprep.mubr.bf16.mxu0 0
        %406 = vmatmul.mubr.bf16.gmra.mxu0 %v308
        %v407 = vpop.f32.mrf.mxu0
        %v408 = vadd.f32 0.0, %v407
        %v409 = vpop.f32.mrf.mxu0
        %v410 = vadd.f32 0.0, %v409
        %v411 = vpop.f32.mrf.mxu0
        %v412 = vpop.f32.mrf.mxu0
        %413 = vdwg.mxu0
        %414 = vmatprep.subr.bf16.mxu0 0
        %415 = vmatpush1.bf16.msra.mxu0 0
        %416 = vmatprep.subr.bf16.mxu0 0
        %417 = vmatpush1.bf16.msra.mxu0 0
        %418 = vmatprep.subr.bf16.mxu0 0
        %419 = vmatpush1.bf16.msra.mxu0 0
        %420 = vmatprep.subr.bf16.mxu0 0
        %421 = vmatpush1.bf16.msra.mxu0 0
        %422 = vmatprep.subr.bf16.mxu0 0
        %423 = vmatpush1.bf16.msra.mxu0 0
        %424 = vmatprep.subr.bf16.mxu0 0
        %425 = vmatpush1.bf16.msra.mxu0 0
        %426 = vmatprep.subr.bf16.mxu0 %v330
        %427 = vmatpush1.bf16.msra.mxu0 %v327
        %428 = vmatprep.subr.bf16.mxu0 %v293
        %429 = vmatpush1.bf16.msra.mxu0 %v292
        %430 = vmatprep.subr.bf16.mxu0 0
        %431 = vmatpush2.bf16.msra.mxu0 0
        %432 = vmatprep.subr.bf16.mxu0 0
        %433 = vmatpush2.bf16.msra.mxu0 0
        %434 = vmatprep.subr.bf16.mxu0 0
        %435 = vmatpush2.bf16.msra.mxu0 0
        %436 = vmatprep.subr.bf16.mxu0 0
        %437 = vmatpush2.bf16.msra.mxu0 0
        %438 = vmatprep.subr.bf16.mxu0 0
        %439 = vmatpush2.bf16.msra.mxu0 0
        %440 = vmatprep.subr.bf16.mxu0 0
        %441 = vmatpush2.bf16.msra.mxu0 0
        %442 = vmatprep.subr.bf16.mxu0 0
        %443 = vmatpush2.bf16.msra.mxu0 0
        %444 = vmatprep.subr.bf16.mxu0 0
        %445 = vmatpush2.bf16.msra.mxu0 0
        %446 = vmatprep.mubr.bf16.mxu0 0
        %447 = vmatmul.mubr.bf16.gmra.mxu0 %v308
        %v448 = vpop.f32.mrf.mxu0
        %v449 = vadd.f32 0.0, %v448
        %v450 = vpop.f32.mrf.mxu0
        %v451 = vadd.f32 0.0, %v450
        %v452 = vpop.f32.mrf.mxu0
        %v453 = vpop.f32.mrf.mxu0
        %454 = vdwg.mxu0
        %v455 = vld [vmem:[%s228] sm:$0xff]
        %v456 = vld [vmem:[%s228 + $0x8] sm:$0xff]
        %v457 = vld [vmem:[%s228 + $0x10] sm:$0xff]
        %v464 = vcombine.low %v367, %v369
        %v465 = vcombine.low %v408, %v410
        %v466 = vcombine.low %v449, %v451
        %v470 = vadd.f32 %v455, %v464
        %v471 = vadd.f32 %v456, %v465
        %v472 = vadd.f32 %v457, %v466
        %473 = vst [vmem:[%s235] sm:$0xff] %v470
        %474 = vst [vmem:[%s235 + $0x8] sm:$0xff] %v471
        %475 = vst [vmem:[%s235 + $0x10] sm:$0xff] %v472
        %s476 = smul.u32 6, %s14
        %p477 = scmp.lt.s32.totalorder %s476, 23
        %s478 = scalar_select %p477, %s476, 23
        %s479 = smul.addr %s478, 4
        %s480 = scalar_lea.vmem %s3, %s479
        // Predicated region
        $region56: #{morphable_forward.1} parent=50 // pred_check
          %p481 = pneg %p105
        $region57: #{morphable_forward.1} parent=50 // pred_check_branch
          %483 = sbr.rel (%p481) target = $region59
        $region58: #{morphable_forward.1} parent=50 // pred_region
          %s484 = smul.u32 6, %s14
        $region59: #{morphable_forward.1} parent=50 // pred_fallthru
          _
      $region51: #{morphable_forward.1} parent=5 // pred_fallthru
        _
      %p485 = scmp.le.s32.totalorder 2, %s9
      // Predicated region
      $region60: #{morphable_forward.1} parent=5 // pred_check
        %p486 = pneg %p485
      $region61: #{morphable_forward.1} parent=5 // pred_check_branch
        %488 = sbr.rel (%p486) target = $region63
      $region62: #{morphable_forward.1} parent=5 // pred_region
        %s489 = ssub.s32 %s9, 2
        // Predicated region
        $region64: #{morphable_forward.1} parent=62 // pred_check
          %p490 = pneg %p111
        $region65: #{morphable_forward.1} parent=62 // pred_check_branch
          %492 = sbr.rel (%p490) target = $region67
        $region66: #{morphable_forward.1} parent=62 // pred_region
          %s493 = smul.u32 6, %s15
          %p494 = scmp.lt.s32.totalorder %s493, 23
          %s495 = scalar_select %p494, %s493, 23
          %s496 = smul.addr %s495, 4
          %s497 = scalar_lea.vmem %s3, %s496
        $region67: #{morphable_forward.1} parent=62 // pred_fallthru
          _
      $region63: #{morphable_forward.1} parent=5 // pred_fallthru
        _
    $region6: #{morphable_forward.1} parent=1 // loop_footer
      %s13 = sadd.s32 1, %s9
    $region7: #{morphable_forward.1} parent=1 // loop_footer_branch
      %8 = sbr.rel target = $region3
    $region8: #{morphable_forward.1} parent=1 // loop_exit
      _

</llo_original>
